<compile_context>
chip_gen: v7x
topology: tpu7x:2x2x1
jax: 0.10.0
libtpu: 0.0.40
codegen_flags: <defaults>
</compile_context>

<pallas_src>
import jax
import jax.numpy as jnp
from jax.experimental import pallas as pl
from jax.experimental.pallas import tpu as pltpu

_LANE = 128
# ~2 MiB per buffer -> <= ~8 MiB total with double-buffered input+output.
_TARGET_TILE_BYTES = 2 * 1024 * 1024


def _sublane_multiple(dtype) -> int:
    """Packed-sublane granularity: 8 for 32-bit, 16 for bf16/f16, 32 for 8-bit dtypes."""
    itemsize = jnp.dtype(dtype).itemsize
    return {4: 8, 2: 16, 1: 32}.get(itemsize, 8)


def _scale_kernel(scale_ref, x_ref, o_ref):
    # scale_ref: (1, 1) float32 scalar resident in SMEM (runtime value, no recompiles).
    s = scale_ref[0, 0]
    # Elementwise hot path: multiply the whole VMEM tile on the VPU.
    # Compute in f32 so integer inputs are scaled correctly, then cast to out dtype.
    o_ref[...] = (x_ref[...].astype(jnp.float32) * s).astype(o_ref.dtype)


def scale_forward(x: jax.Array, scale, *, tile_bytes: int = _TARGET_TILE_BYTES) -> jax.Array:
    """Compute x * scale with a Pallas TPU kernel (any shape; float/int dtypes)."""
    orig_shape = x.shape
    in_dtype = x.dtype
    # Match PyTorch promotion: int_tensor * python_float -> floating result.
    if jnp.issubdtype(in_dtype, jnp.floating):
        out_dtype = in_dtype
    else:
        out_dtype = jnp.float32

    n = x.size
    if n == 0:
        return jnp.zeros(orig_shape, dtype=out_dtype)

    sub = max(_sublane_multiple(in_dtype), _sublane_multiple(out_dtype))

    x_flat = x.reshape(-1)
    padded_n = n
    if n % _LANE == 0:
        # Lane-aligned: pure reshape, no padding copy on the hot path.
        width = _LANE
        for cand in (1024, 512, 256):
            if n % cand == 0:
                width = cand
                break
    else:
        # Ragged tail (rare fallback): pad flat length to a sublane-aligned slab.
        width = _LANE
        pad_to = sub * _LANE
        n_pad = (-n) % pad_to
        x_flat = jnp.pad(x_flat, (0, n_pad))
        padded_n = n + n_pad

    rows = padded_n // width
    x2d = x_flat.reshape(rows, width)

    # Row-tile sizing: ~tile_bytes per buffer, aligned to the packed-sublane count.
    itemsize = max(jnp.dtype(in_dtype).itemsize, jnp.dtype(out_dtype).itemsize)
    tile_rows = max(tile_bytes // (width * itemsize), 1)
    if tile_rows >= rows:
        tile_rows = rows                       # full extent: always a legal block shape
    else:
        tile_rows = max((tile_rows // sub) * sub, sub)
    grid_rows = pl.cdiv(rows, tile_rows)       # last block may be partial (masked writes)

    scale_arr = jnp.asarray(scale, dtype=jnp.float32).reshape(1, 1)

    out2d = pl.pallas_call(
        _scale_kernel,
        out_shape=jax.ShapeDtypeStruct((rows, width), out_dtype),
        grid=(grid_rows,),
        in_specs=[
            pl.BlockSpec(memory_space=pltpu.MemorySpace.SMEM),
            pl.BlockSpec((tile_rows, width), lambda i: (i, 0)),
        ],
        out_specs=pl.BlockSpec((tile_rows, width), lambda i: (i, 0)),
        compiler_params=pltpu.CompilerParams(
            dimension_semantics=("parallel",),
        ),
    )(scale_arr, x2d)

    out_flat = out2d.reshape(-1)
    if padded_n != n:
        out_flat = out_flat[:n]
    return out_flat.reshape(orig_shape)


if __name__ == "__main__":
    k0, k1, k2 = jax.random.split(jax.random.PRNGKey(0), 3)
    scale = 1.0 / 255.0

    fwd = jax.jit(scale_forward, static_argnames=("tile_bytes",))

    # 1) Primary: NCHW float32 feature map (as the PPO conv stack would see).
    x = jax.random.normal(k0, (2, 4, 16, 16), dtype=jnp.float32)
    out = jax.block_until_ready(fwd(x, scale))
    ref = x * scale
    assert out.shape == x.shape and out.dtype == x.dtype
    assert jnp.allclose(out, ref, atol=1e-6, rtol=1e-6)

    # 2) uint8 image input (the actual minigrid use case): promotes to float32 like torch,
    #    and exercises the ragged-tail pad fallback (294 elements, not lane-aligned).
    x_img = jax.random.randint(k1, (2, 3, 7, 7), 0, 256, dtype=jnp.int32).astype(jnp.uint8)
    out_img = jax.block_until_ready(fwd(x_img, scale))
    ref_img = x_img.astype(jnp.float32) * scale
    assert out_img.shape == x_img.shape and out_img.dtype == jnp.float32
    assert jnp.allclose(out_img, ref_img, atol=1e-6, rtol=1e-6)

    # 3) Tiny tile override to exercise a multi-step grid with a partial last block.
    x3 = jax.random.normal(k2, (2, 3, 20, 128), dtype=jnp.float32)
    out3 = jax.block_until_ready(fwd(x3, scale, tile_bytes=4096))
    assert jnp.allclose(out3, x3 * scale, atol=1e-6, rtol=1e-6)

    # 4) bfloat16 input stays bfloat16 (computed in f32 inside the kernel).
    x4 = jax.random.normal(k0, (2, 4, 16, 16), dtype=jnp.bfloat16)
    out4 = jax.block_until_ready(fwd(x4, scale))
    ref4 = (x4.astype(jnp.float32) * scale).astype(jnp.bfloat16)
    assert out4.dtype == jnp.bfloat16
    assert jnp.allclose(out4.astype(jnp.float32), ref4.astype(jnp.float32), atol=1e-3, rtol=1e-2)

    print("KERNEL_OK")
</pallas_src>

<mosaic_0001>
module attributes {stable_mosaic.version = 11 : i64} {
  func.func @_scale_kernel(%arg0: i32, %arg1: memref<1x1xf32, #tpu.memory_space<smem>>, %arg2: memref<2x1024xf32, #tpu.memory_space<vmem>>, %arg3: memref<2x1024xf32, #tpu.memory_space<vmem>>) attributes {dimension_semantics = [#tpu.dimension_semantics<parallel>], iteration_bounds = array<i64: 1>, scalar_prefetch = 0 : i64, scratch_operands = 0 : i64, tpu.core_type = #tpu.core_type<tc>, window_params = [{transform_indices = @transform_0, window_bounds = array<i64: 1, 1>}, {transform_indices = @transform_1, window_bounds = array<i64: 2, 1024>}, {transform_indices = @transform_2, window_bounds = array<i64: 2, 1024>}]} {
    %c0 = arith.constant 0 : index
    %c0_0 = arith.constant 0 : index
    %0 = memref.load %arg1[%c0, %c0_0] : memref<1x1xf32, #tpu.memory_space<smem>>
    %c0_1 = arith.constant 0 : index
    %c0_2 = arith.constant 0 : index
    %1 = vector.load %arg2[%c0_1, %c0_2] : memref<2x1024xf32, #tpu.memory_space<vmem>>, vector<2x1024xf32>
    %2 = vector.broadcast %0 : f32 to vector<2x1024xf32>
    %3 = arith.mulf %1, %2 : vector<2x1024xf32>
    %c0_3 = arith.constant 0 : index
    %c0_4 = arith.constant 0 : index
    %4 = vector.load %arg3[%c0_3, %c0_4] : memref<2x1024xf32, #tpu.memory_space<vmem>>, vector<2x1024xf32>
    tpu.vector_store %arg3[%c0_3, %c0_4], %3 {strides = array<i32>} : memref<2x1024xf32, #tpu.memory_space<vmem>>, vector<2x1024xf32>,
    return
  }
  func.func @transform_0(%arg0: i32) -> (i32, i32) {
    %c0_i32 = arith.constant 0 : i32
    %c0_i32_0 = arith.constant 0 : i32
    %c0_i32_1 = arith.constant 0 : i32
    return %c0_i32, %c0_i32_0 : i32, i32
  }
  func.func @transform_1(%arg0: i32) -> (i32, i32) {
    %c0_i32 = arith.constant 0 : i32
    %c0_i32_0 = arith.constant 0 : i32
    return %arg0, %c0_i32 : i32, i32
  }
  func.func @transform_2(%arg0: i32) -> (i32, i32) {
    %c0_i32 = arith.constant 0 : i32
    %c0_i32_0 = arith.constant 0 : i32
    return %arg0, %c0_i32 : i32, i32
  }
}

</mosaic_0001>

<llo_original>
// kernel: scale_forward.1
$region0: #{scale_forward.1}
  #allocation0 [shape = 'u32[]', space=smem, size = 0x4, offset = 0x4, fixed_abs, tag = 'smem constant byte address 0x4 - core index']
  #allocation1 [shape = 'u32[144,128]{1,0:T(1,128)}', space=vmem, size = 0x12000, scoped, tag = 'internal scratch']
  #allocation2 [shape = 'f32[1,1]{1,0:T(1,128)S(6)}', space=smem, size = 0x200, scoped, tag = 'scoped memory for scale_forward.1']
  %s0 = inlined_call_operand.<no memory space> [shape: f32[1,1], index: 0, kind: input, shape index: {}]
  %s1 = inlined_call_operand.vmem [shape: f32[2,1024], index: 1, kind: input, shape index: {}]
  %s2 = inlined_call_operand.vmem [shape: f32[2,1024], index: 2, kind: output, shape index: {}]
  %s3 = sld [smem:[#allocation0]]
  $region18: #{scale_forward.1} parent=0
    _
  %s5 = ssub.s32 1, %s3
  %s6 = scalar_select 0, %s5, %s3
  %7 = sst [smem:[#allocation2]] %s0
  // Predicated region
  $region2: #{scale_forward.1} parent=0 // pred_check
    _
  $region3: #{scale_forward.1} parent=0 // pred_check_branch
    %9 = sbr.rel (0) target = $region5
  $region4: #{scale_forward.1} parent=0 // pred_region
    _
  $region5: #{scale_forward.1} parent=0 // pred_fallthru
    _
  // Predicated region
  $region6: #{scale_forward.1} parent=0 // pred_check
    _
  $region7: #{scale_forward.1} parent=0 // pred_check_branch
    %11 = sbr.rel (0) target = $region9
  $region8: #{scale_forward.1} parent=0 // pred_region
    _
  $region9: #{scale_forward.1} parent=0 // pred_fallthru
    _
  %s12 = sld [smem:[#allocation2]]
  %v13 = vld [vmem:[%s1] sm:$0xff]
  %v14 = vld [vmem:[%s1 + $0x8] sm:$0xff]
  %v15 = vstv %s12
  %v16 = vmul.f32 %v13, %v15
  %v17 = vmul.f32 %v14, %v15
  %18 = vst [vmem:[%s2] sm:$0xff] %v16
  %19 = vst [vmem:[%s2 + $0x8] sm:$0xff] %v17
  // Predicated region
  $region10: #{scale_forward.1} parent=0 // pred_check
    _
  $region11: #{scale_forward.1} parent=0 // pred_check_branch
    %21 = sbr.rel (0) target = $region13
  $region12: #{scale_forward.1} parent=0 // pred_region
    _
  $region13: #{scale_forward.1} parent=0 // pred_fallthru
    _
  // Predicated region
  $region14: #{scale_forward.1} parent=0 // pred_check
    _
  $region15: #{scale_forward.1} parent=0 // pred_check_branch
    %23 = sbr.rel (0) target = $region17
  $region16: #{scale_forward.1} parent=0 // pred_region
    _
  $region17: #{scale_forward.1} parent=0 // pred_fallthru
    _

</llo_original>
